<compile_context>
chip_gen: v7x
topology: tpu7x:2x2x1
jax: 0.10.0
libtpu: 0.0.40
codegen_flags: <defaults>
</compile_context>

<pallas_src>
import functools

import jax
import jax.numpy as jnp
from jax import lax
from jax.experimental import pallas as pl
from jax.experimental.pallas import tpu as pltpu

EPS = 1e-5


def _row_tile(h, target=8):
    """Largest divisor of h that is <= target."""
    r = min(target, h)
    while h % r:
        r -= 1
    return r


def _first_dim_tile(total, target, need_align8):
    """Largest divisor of `total` <= target (optionally 8-aligned or == total)."""
    r = min(target, total)
    while r > 1:
        if total % r == 0 and (not need_align8 or r % 8 == 0 or r == total):
            return r
        r -= 1
    return total if need_align8 else 1


def _im2col(slab, rows, width, c):
    """(rows+2, width+2, c) slab -> (rows*width, 9*c) patches, tap order (dh, dw, c)."""
    wide = jnp.concatenate(
        [slab[:, 0:width, :], slab[:, 1:width + 1, :], slab[:, 2:width + 2, :]],
        axis=-1)                                              # (rows+2, width, 3c)
    p = jnp.concatenate([wide[0:rows], wide[1:rows + 1], wide[2:rows + 2]],
                        axis=-1)                              # (rows, width, 9c)
    return p.reshape(rows * width, 9 * c)


# --------------------------------------------------------------------------
# Kernel 1: ConvTranspose2d(k=2, s=2) channel-mixing matmul (tiled over rows).
# --------------------------------------------------------------------------
def _deconv_kernel(x_ref, w_ref, b_ref, o_ref):
    o_ref[...] = (
        jnp.dot(x_ref[...], w_ref[...], preferred_element_type=jnp.float32)
        + b_ref[...]
    )


# --------------------------------------------------------------------------
# Kernel 2 (pass 1): conv1 on a row tile; channel-concat of the two sources is
# fused (two dots against the split weight).  Emits per-tile BN partial sums.
# Output is stored with zero left/right columns (W-padded) in one full store.
# --------------------------------------------------------------------------
def _conv1_kernel(R, W, C1, CU, CM,
                  x1m_ref, x1a_ref, x1b_ref,
                  upm_ref, upa_ref, upb_ref,
                  w1a_ref, w1b_ref, b1_ref,
                  y_ref, st_ref):
    slab1 = jnp.concatenate([x1m_ref[0], x1a_ref[0], x1b_ref[0]], axis=0)
    slab2 = jnp.concatenate([upm_ref[0], upa_ref[0], upb_ref[0]], axis=0)
    p1 = _im2col(slab1, R, W, C1)
    p2 = _im2col(slab2, R, W, CU)
    res = (jnp.dot(p1, w1a_ref[...], preferred_element_type=jnp.float32)
           + jnp.dot(p2, w1b_ref[...], preferred_element_type=jnp.float32)
           + b1_ref[...])                                     # (R*W, CM)

    s = jnp.sum(res, axis=0, keepdims=True)
    ss = jnp.sum(res * res, axis=0, keepdims=True)
    st_ref[0, 0] = jnp.concatenate([s, ss], axis=0)

    res3 = res.reshape(R, W, CM)
    zc = jnp.zeros((R, 1, CM), jnp.float32)
    y_ref[0] = jnp.concatenate([zc, res3, zc], axis=1)        # W-padded block


# --------------------------------------------------------------------------
# Kernel 3 (pass 2): BN1 affine + ReLU (with spatial zero-padding rebuilt via a
# mask) -> conv2 on the same row tile.  Emits per-tile BN partial sums.
# --------------------------------------------------------------------------
def _conv2_kernel(R, W, CM,
                  ym_ref, yt_ref, yb_ref, sc_ref, sh_ref, w2_ref, b2_ref,
                  o_ref, st_ref):
    t = pl.program_id(1)
    T = pl.num_programs(1)

    slab = jnp.concatenate([yt_ref[0], ym_ref[0], yb_ref[0]], axis=0)  # (R+2,W+2,CM)
    act = jnp.maximum(slab * sc_ref[...] + sh_ref[...], 0.0)

    # rebuild spatial zero-padding after the affine: side columns always zero;
    # the clamped halo row is zeroed when the tile touches the image border.
    col = lax.broadcasted_iota(jnp.int32, (R + 2, W + 2, 1), 1)
    row = lax.broadcasted_iota(jnp.int32, (R + 2, W + 2, 1), 0)
    valid = (col >= 1) & (col <= W)
    valid = valid & jnp.logical_or(row > 0, t > 0)
    valid = valid & jnp.logical_or(row < R + 1, t < T - 1)
    act = jnp.where(valid, act, 0.0)

    p = _im2col(act, R, W, CM)
    res = (jnp.dot(p, w2_ref[...], preferred_element_type=jnp.float32)
           + b2_ref[...])                                     # (R*W, CM)

    s = jnp.sum(res, axis=0, keepdims=True)
    ss = jnp.sum(res * res, axis=0, keepdims=True)
    st_ref[0, 0] = jnp.concatenate([s, ss], axis=0)
    o_ref[0] = res.reshape(o_ref.shape[1:])   # (R, W*CM) lane-dense or (R, W, CM)


# --------------------------------------------------------------------------
# Kernel 4 (pass 3): BN2 affine + ReLU, one vector statement per block.
# --------------------------------------------------------------------------
def _bn_relu_kernel(y_ref, sc_ref, sh_ref, o_ref):
    o_ref[...] = jnp.maximum(y_ref[...] * sc_ref[...] + sh_ref[...], 0.0)


# --------------------------------------------------------------------------
# Wrapper: unetUp.forward(inputs1, inputs2) with is_deconv=True.
# --------------------------------------------------------------------------
def unet_up_forward(inputs1, inputs2, params):
    """inputs1: (N, C1, H, W), inputs2: (N, in_size, H2, W2), NCHW like PyTorch."""
    f32 = jnp.float32
    N, C1, H, W = inputs1.shape
    _, CIN, H2, W2 = inputs2.shape
    wt, bt = params["up_w"], params["up_b"]        # (CIN, CM, 2, 2), (CM,)
    CM = wt.shape[1]

    # ---- self.up = ConvTranspose2d(in, out, 2, 2): tiled matmul ------------
    x2 = jnp.transpose(inputs2, (0, 2, 3, 1)).reshape(N * H2 * W2, CIN)
    wtf = jnp.transpose(wt, (0, 2, 3, 1)).reshape(CIN, 4 * CM)   # (ci,ki,kj,co)
    btf = jnp.tile(bt, 4).reshape(1, 4 * CM)
    M = N * H2 * W2
    TM = min(256, M)
    y4 = pl.pallas_call(
        _deconv_kernel,
        out_shape=jax.ShapeDtypeStruct((M, 4 * CM), f32),
        grid=(pl.cdiv(M, TM),),
        in_specs=[pl.BlockSpec((TM, CIN), lambda i: (i, 0)),
                  pl.BlockSpec((CIN, 4 * CM), lambda i: (0, 0)),
                  pl.BlockSpec((1, 4 * CM), lambda i: (0, 0))],
        out_specs=pl.BlockSpec((TM, 4 * CM), lambda i: (i, 0)),
        compiler_params=pltpu.CompilerParams(dimension_semantics=("parallel",)),
        cost_estimate=pl.CostEstimate(
            flops=2 * M * CIN * 4 * CM, transcendentals=0,
            bytes_accessed=4 * (M * CIN + CIN * 4 * CM + M * 4 * CM)),
    )(x2, wtf, btf)

    # 2x2 pixel-shuffle + F.pad offsets + conv zero-pad (cheap XLA glue on the
    # small pre-concat tensor).
    up = y4.reshape(N, H2, W2, 2, 2, CM)
    up = jnp.transpose(up, (0, 1, 3, 2, 4, 5)).reshape(N, 2 * H2, 2 * W2, CM)

    Hu, Wu = 2 * H2, 2 * W2
    off_w, off_h = W - Wu, H - Hu
    # TODO(synk): negative offsets (F.pad cropping path) are not handled.
    pad_l, pad_r = off_w // 2, off_w - off_w // 2
    pad_t, pad_b = off_h // 2, off_h - off_h // 2
    upp = jnp.pad(up, ((0, 0), (pad_t + 1, pad_b + 1), (pad_l + 1, pad_r + 1), (0, 0)))
    x1p = jnp.pad(jnp.transpose(inputs1, (0, 2, 3, 1)),
                  ((0, 0), (1, 1), (1, 1), (0, 0)))

    # ---- conv weights rearranged for tap-major im2col ----------------------
    w1 = params["c1_w"]                                  # (CM, C1+CM, 3, 3)
    w1a = jnp.transpose(w1[:, :C1], (2, 3, 1, 0)).reshape(9 * C1, CM)
    w1b = jnp.transpose(w1[:, C1:], (2, 3, 1, 0)).reshape(9 * CM, CM)
    b1 = params["c1_b"].reshape(1, CM)
    w2 = jnp.transpose(params["c2_w"], (2, 3, 1, 0)).reshape(9 * CM, CM)
    b2 = params["c2_b"].reshape(1, CM)

    R = _row_tile(H, 8)
    T = H // R
    cnt = float(N * H * W)

    def main_spec(c):
        return pl.BlockSpec((1, R, W + 2, c), lambda n, t: (n, t, 0, 0))

    def halo_spec(c, d):
        # single-row blocks => block index == element row index
        return pl.BlockSpec((1, 1, W + 2, c),
                            lambda n, t, d=d: (n, t * R + R + d, 0, 0))

    # ---- pass 1: conv1 (+ fused concat) + BN1 partial statistics -----------
    y1p, st1 = pl.pallas_call(
        functools.partial(_conv1_kernel, R, W, C1, CM, CM),
        out_shape=(jax.ShapeDtypeStruct((N, H, W + 2, CM), f32),
                   jax.ShapeDtypeStruct((N, T, 2, CM), f32)),
        grid=(N, T),
        in_specs=[main_spec(C1), halo_spec(C1, 0), halo_spec(C1, 1),
                  main_spec(CM), halo_spec(CM, 0), halo_spec(CM, 1),
                  pl.BlockSpec((9 * C1, CM), lambda n, t: (0, 0)),
                  pl.BlockSpec((9 * CM, CM), lambda n, t: (0, 0)),
                  pl.BlockSpec((1, CM), lambda n, t: (0, 0))],
        out_specs=(pl.BlockSpec((1, R, W + 2, CM), lambda n, t: (n, t, 0, 0)),
                   pl.BlockSpec((1, 1, 2, CM), lambda n, t: (n, t, 0, 0))),
        compiler_params=pltpu.CompilerParams(
            dimension_semantics=("parallel", "parallel")),
        cost_estimate=pl.CostEstimate(
            flops=2 * N * H * W * 9 * (C1 + CM) * CM, transcendentals=0,
            bytes_accessed=4 * (N * (H + 2) * (W + 2) * (C1 + CM)
                                + N * H * (W + 2) * CM
                                + 9 * (C1 + CM) * CM + N * T * 2 * CM)),
    )(x1p, x1p, x1p, upp, upp, upp, w1a, w1b, b1)

    # BN1 scale/shift from batch statistics (tiny (2, CM) reduction in XLA).
    # NOTE: E[x^2]-E[x]^2 in f32; fine at these scales, can drift for huge
    # activations.
    s1 = jnp.sum(st1, axis=(0, 1))
    m1 = s1[0] / cnt
    v1 = s1[1] / cnt - m1 * m1
    inv1 = lax.rsqrt(v1 + EPS)
    sc1 = (params["bn1_g"] * inv1).reshape(1, CM)
    sh1 = (params["bn1_b"] - m1 * params["bn1_g"] * inv1).reshape(1, CM)

    # lane-dense output layout for pass2/pass3 (rows on sublanes, W*CM on lanes)
    # is only legal when the row tile is 8-aligned (or full); else fall back to
    # the channel-minor 4D layout.
    lane_dense = (R % 8 == 0) or (R == H)
    WC = W * CM
    if lane_dense:
        y2_shape = (N, H, WC)
        y2_block = pl.BlockSpec((1, R, WC), lambda n, t: (n, t, 0))
    else:
        y2_shape = (N, H, W, CM)
        y2_block = pl.BlockSpec((1, R, W, CM), lambda n, t: (n, t, 0, 0))

    # ---- pass 2: BN1+ReLU -> conv2 + BN2 partial statistics ----------------
    y2, st2 = pl.pallas_call(
        functools.partial(_conv2_kernel, R, W, CM),
        out_shape=(jax.ShapeDtypeStruct(y2_shape, f32),
                   jax.ShapeDtypeStruct((N, T, 2, CM), f32)),
        grid=(N, T),
        in_specs=[
            pl.BlockSpec((1, R, W + 2, CM), lambda n, t: (n, t, 0, 0)),
            pl.BlockSpec((1, 1, W + 2, CM),
                         lambda n, t: (n, jnp.maximum(t * R - 1, 0), 0, 0)),
            pl.BlockSpec((1, 1, W + 2, CM),
                         lambda n, t: (n, jnp.minimum(t * R + R, H - 1), 0, 0)),
            pl.BlockSpec((1, CM), lambda n, t: (0, 0)),
            pl.BlockSpec((1, CM), lambda n, t: (0, 0)),
            pl.BlockSpec((9 * CM, CM), lambda n, t: (0, 0)),
            pl.BlockSpec((1, CM), lambda n, t: (0, 0))],
        out_specs=(y2_block,
                   pl.BlockSpec((1, 1, 2, CM), lambda n, t: (n, t, 0, 0))),
        compiler_params=pltpu.CompilerParams(
            dimension_semantics=("parallel", "parallel")),
        cost_estimate=pl.CostEstimate(
            flops=2 * N * H * W * 9 * CM * CM, transcendentals=0,
            bytes_accessed=4 * (N * (H + 2) * (W + 2) * CM
                                + 2 * N * H * W * CM
                                + 9 * CM * CM + N * T * 2 * CM)),
    )(y1p, y1p, y1p, sc1, sh1, w2, b2)

    s2 = jnp.sum(st2, axis=(0, 1))
    m2 = s2[0] / cnt
    v2 = s2[1] / cnt - m2 * m2
    inv2 = lax.rsqrt(v2 + EPS)
    sc2 = (params["bn2_g"] * inv2).reshape(1, CM)
    sh2 = (params["bn2_b"] - m2 * params["bn2_g"] * inv2).reshape(1, CM)

    # ---- pass 3: BN2 + ReLU (elementwise, tiled, lane-dense when legal) -----
    if lane_dense:
        y2f = y2.reshape(N * H, WC)
        RT = _first_dim_tile(N * H, 64, need_align8=True)
        sc2w = jnp.tile(sc2, (1, W))
        sh2w = jnp.tile(sh2, (1, W))
        out = pl.pallas_call(
            _bn_relu_kernel,
            out_shape=jax.ShapeDtypeStruct((N * H, WC), f32),
            grid=(N * H // RT,),
            in_specs=[pl.BlockSpec((RT, WC), lambda i: (i, 0)),
                      pl.BlockSpec((1, WC), lambda i: (0, 0)),
                      pl.BlockSpec((1, WC), lambda i: (0, 0))],
            out_specs=pl.BlockSpec((RT, WC), lambda i: (i, 0)),
            compiler_params=pltpu.CompilerParams(
                dimension_semantics=("parallel",)),
        )(y2f, sc2w, sh2w)
    else:
        y2f = y2.reshape(N * H, W, CM)
        RT = _first_dim_tile(N * H, 64, need_align8=False)
        out = pl.pallas_call(
            _bn_relu_kernel,
            out_shape=jax.ShapeDtypeStruct((N * H, W, CM), f32),
            grid=(N * H // RT,),
            in_specs=[pl.BlockSpec((RT, W, CM), lambda i: (i, 0, 0)),
                      pl.BlockSpec((1, CM), lambda i: (0, 0)),
                      pl.BlockSpec((1, CM), lambda i: (0, 0))],
            out_specs=pl.BlockSpec((RT, W, CM), lambda i: (i, 0, 0)),
            compiler_params=pltpu.CompilerParams(
                dimension_semantics=("parallel",)),
        )(y2f, sc2, sh2)

    out = out.reshape(N, H, W, CM)
    return jnp.transpose(out, (0, 3, 1, 2))   # back to NCHW


# --------------------------------------------------------------------------
# Pure-JAX reference (NCHW) for a correctness check.
# --------------------------------------------------------------------------
def ref_forward(inputs1, inputs2, params):
    N, C1, H1, W1 = inputs1.shape
    _, CIN, H2, W2 = inputs2.shape
    wt, bt = params["up_w"], params["up_b"]
    CMID = wt.shape[1]
    up = jnp.einsum("ncij,cokl->noikjl", inputs2, wt).reshape(
        N, CMID, 2 * H2, 2 * W2) + bt[None, :, None, None]

    Hu, Wu = 2 * H2, 2 * W2
    offset, offset2 = W1 - Wu, H1 - Hu
    pad_l = offset // 2
    pad_r = offset - offset // 2
    pad_t = offset2 // 2
    pad_b = offset2 - offset2 // 2
    up = jnp.pad(up, ((0, 0), (0, 0), (pad_t, pad_b), (pad_l, pad_r)))

    x = jnp.concatenate([inputs1, up], axis=1)

    def conv_bn_relu(x, w, b, g, be):
        y = lax.conv_general_dilated(
            x, w, (1, 1), ((1, 1), (1, 1)),
            dimension_numbers=("NCHW", "OIHW", "NCHW"),
            precision=lax.Precision.HIGHEST)
        y = y + b[None, :, None, None]
        m = jnp.mean(y, axis=(0, 2, 3), keepdims=True)
        v = jnp.mean((y - m) ** 2, axis=(0, 2, 3), keepdims=True)
        y = (y - m) * lax.rsqrt(v + EPS) * g[None, :, None, None] \
            + be[None, :, None, None]
        return jnp.maximum(y, 0.0)

    y = conv_bn_relu(x, params["c1_w"], params["c1_b"],
                     params["bn1_g"], params["bn1_b"])
    y = conv_bn_relu(y, params["c2_w"], params["c2_b"],
                     params["bn2_g"], params["bn2_b"])
    return y


if __name__ == "__main__":
    key = jax.random.PRNGKey(0)
    # unetUp(in_size=8, out_size=4, is_deconv=True)
    in_size, out_size = 8, 4
    N, H, W = 2, 16, 16
    H2, W2 = 8, 8
    C1 = in_size - out_size            # skip-connection channels

    ks = jax.random.split(key, 12)
    inputs1 = jax.random.normal(ks[0], (N, C1, H, W), jnp.float32)
    inputs2 = jax.random.normal(ks[1], (N, in_size, H2, W2), jnp.float32)

    params = {
        # ConvTranspose2d(in_size, out_size, 2, 2): weight (in, out, 2, 2)
        "up_w": 0.1 * jax.random.normal(ks[2], (in_size, out_size, 2, 2), jnp.float32),
        "up_b": 0.1 * jax.random.normal(ks[3], (out_size,), jnp.float32),
        # Conv2d(in_size, out_size, 3, 1, 1)
        "c1_w": 0.1 * jax.random.normal(ks[4], (out_size, in_size, 3, 3), jnp.float32),
        "c1_b": 0.1 * jax.random.normal(ks[5], (out_size,), jnp.float32),
        "bn1_g": 1.0 + 0.1 * jax.random.normal(ks[6], (out_size,), jnp.float32),
        "bn1_b": 0.1 * jax.random.normal(ks[7], (out_size,), jnp.float32),
        # Conv2d(out_size, out_size, 3, 1, 1)
        "c2_w": 0.1 * jax.random.normal(ks[8], (out_size, out_size, 3, 3), jnp.float32),
        "c2_b": 0.1 * jax.random.normal(ks[9], (out_size,), jnp.float32),
        "bn2_g": 1.0 + 0.1 * jax.random.normal(ks[10], (out_size,), jnp.float32),
        "bn2_b": 0.1 * jax.random.normal(ks[11], (out_size,), jnp.float32),
    }

    out = unet_up_forward(inputs1, inputs2, params)
    out = jax.block_until_ready(out)
    assert out.shape == (N, out_size, H, W), out.shape

    ref = jax.block_until_ready(ref_forward(inputs1, inputs2, params))
    err = float(jnp.max(jnp.abs(out - ref)))
    assert jnp.allclose(out, ref, atol=2e-3, rtol=2e-3), err

    print("KERNEL_OK")
</pallas_src>

<mosaic_0001>
module attributes {stable_mosaic.version = 11 : i64} {
  func.func @_deconv_kernel(%arg0: i32, %arg1: memref<128x8xf32, #tpu.memory_space<vmem>>, %arg2: memref<8x16xf32, #tpu.memory_space<vmem>>, %arg3: memref<1x16xf32, #tpu.memory_space<vmem>>, %arg4: memref<128x16xf32, #tpu.memory_space<vmem>>) attributes {dimension_semantics = [#tpu.dimension_semantics<parallel>], iteration_bounds = array<i64: 1>, scalar_prefetch = 0 : i64, scratch_operands = 0 : i64, tpu.core_type = #tpu.core_type<tc>, window_params = [{transform_indices = @transform_0, window_bounds = array<i64: 128, 8>}, {pipeline_mode = #tpu.pipeline_mode<synchronous>, transform_indices = @transform_1, window_bounds = array<i64: 8, 16>}, {pipeline_mode = #tpu.pipeline_mode<synchronous>, transform_indices = @transform_2, window_bounds = array<i64: 1, 16>}, {transform_indices = @transform_3, window_bounds = array<i64: 128, 16>}]} {
    %c0 = arith.constant 0 : index
    %c0_0 = arith.constant 0 : index
    %0 = vector.load %arg1[%c0, %c0_0] : memref<128x8xf32, #tpu.memory_space<vmem>>, vector<128x8xf32>
    %c0_1 = arith.constant 0 : index
    %c0_2 = arith.constant 0 : index
    %1 = vector.load %arg2[%c0_1, %c0_2] : memref<8x16xf32, #tpu.memory_space<vmem>>, vector<8x16xf32>
    %cst = arith.constant dense<0.000000e+00> : vector<128x16xf32>
    %2 = tpu.matmul %0, %1, %cst {dimension_numbers = #tpu.dot_dimension_numbers<[1], [0], [0], [1], [0, 0, 1, 1], [], []>} : vector<128x8xf32>, vector<8x16xf32>, vector<128x16xf32> -> vector<128x16xf32>
    %c0_3 = arith.constant 0 : index
    %c0_4 = arith.constant 0 : index
    %3 = vector.load %arg3[%c0_3, %c0_4] : memref<1x16xf32, #tpu.memory_space<vmem>>, vector<1x16xf32>
    %4 = vector.broadcast %3 : vector<1x16xf32> to vector<128x16xf32>
    %5 = arith.addf %2, %4 : vector<128x16xf32>
    %c0_5 = arith.constant 0 : index
    %c0_6 = arith.constant 0 : index
    %6 = vector.load %arg4[%c0_5, %c0_6] : memref<128x16xf32, #tpu.memory_space<vmem>>, vector<128x16xf32>
    tpu.vector_store %arg4[%c0_5, %c0_6], %5 {strides = array<i32>} : memref<128x16xf32, #tpu.memory_space<vmem>>, vector<128x16xf32>,
    return
  }
  func.func @transform_0(%arg0: i32) -> (i32, i32) {
    %c0_i32 = arith.constant 0 : i32
    %c0_i32_0 = arith.constant 0 : i32
    return %arg0, %c0_i32 : i32, i32
  }
  func.func @transform_1(%arg0: i32) -> (i32, i32) {
    %c0_i32 = arith.constant 0 : i32
    %c0_i32_0 = arith.constant 0 : i32
    %c0_i32_1 = arith.constant 0 : i32
    return %c0_i32, %c0_i32_0 : i32, i32
  }
  func.func @transform_2(%arg0: i32) -> (i32, i32) {
    %c0_i32 = arith.constant 0 : i32
    %c0_i32_0 = arith.constant 0 : i32
    %c0_i32_1 = arith.constant 0 : i32
    return %c0_i32, %c0_i32_0 : i32, i32
  }
  func.func @transform_3(%arg0: i32) -> (i32, i32) {
    %c0_i32 = arith.constant 0 : i32
    %c0_i32_0 = arith.constant 0 : i32
    return %arg0, %c0_i32 : i32, i32
  }
}

</mosaic_0001>

<llo_original>
// kernel: tpu_custom_call.1
$region0: #{tpu_custom_call.1}
  #allocation0 [shape = 'u32[]', space=smem, size = 0x4, offset = 0x4, fixed_abs, tag = 'smem constant byte address 0x4 - core index']
  #allocation1 [shape = 'u32[144,128]{1,0:T(1,128)}', space=vmem, size = 0x12000, scoped, tag = 'internal scratch']
  %s0 = inlined_call_operand.vmem [shape: f32[128,8], index: 0, kind: input, shape index: {}]
  %s1 = inlined_call_operand.vmem [shape: f32[8,16], index: 1, kind: input, shape index: {}]
  %s2 = inlined_call_operand.vmem [shape: f32[1,16], index: 2, kind: input, shape index: {}]
  %s3 = inlined_call_operand.vmem [shape: f32[128,16], index: 3, kind: output, shape index: {}]
  %s4 = sld [smem:[#allocation0]]
  $region22: #{tpu_custom_call.1} parent=0
    _
  %s6 = ssub.s32 1, %s4
  %s7 = scalar_select 0, %s6, %s4
  // Predicated region
  $region2: #{tpu_custom_call.1} parent=0 // pred_check
    _
  $region3: #{tpu_custom_call.1} parent=0 // pred_check_branch
    %9 = sbr.rel (0) target = $region5
  $region4: #{tpu_custom_call.1} parent=0 // pred_region
    _
  $region5: #{tpu_custom_call.1} parent=0 // pred_fallthru
    _
  // Predicated region
  $region6: #{tpu_custom_call.1} parent=0 // pred_check
    _
  $region7: #{tpu_custom_call.1} parent=0 // pred_check_branch
    %11 = sbr.rel (0) target = $region9
  $region8: #{tpu_custom_call.1} parent=0 // pred_region
    _
  $region9: #{tpu_custom_call.1} parent=0 // pred_fallthru
    _
  // Predicated region
  $region10: #{tpu_custom_call.1} parent=0 // pred_check
    _
  $region11: #{tpu_custom_call.1} parent=0 // pred_check_branch
    %13 = sbr.rel (0) target = $region13
  $region12: #{tpu_custom_call.1} parent=0 // pred_region
    _
  $region13: #{tpu_custom_call.1} parent=0 // pred_fallthru
    _
  %v14 = vld [vmem:[%s0] sm:$0xff]
  %v15 = vld [vmem:[%s0 + $0x8] sm:$0xff]
  %v16 = vld [vmem:[%s0 + $0x10] sm:$0xff]
  %v17 = vld [vmem:[%s0 + $0x18] sm:$0xff]
  %v18 = vld [vmem:[%s0 + $0x20] sm:$0xff]
  %v19 = vld [vmem:[%s0 + $0x28] sm:$0xff]
  %v20 = vld [vmem:[%s0 + $0x30] sm:$0xff]
  %v21 = vld [vmem:[%s0 + $0x38] sm:$0xff]
  %v22 = vld [vmem:[%s0 + $0x40] sm:$0xff]
  %v23 = vld [vmem:[%s0 + $0x48] sm:$0xff]
  %v24 = vld [vmem:[%s0 + $0x50] sm:$0xff]
  %v25 = vld [vmem:[%s0 + $0x58] sm:$0xff]
  %v26 = vld [vmem:[%s0 + $0x60] sm:$0xff]
  %v27 = vld [vmem:[%s0 + $0x68] sm:$0xff]
  %v28 = vld [vmem:[%s0 + $0x70] sm:$0xff]
  %v29 = vld [vmem:[%s0 + $0x78] sm:$0xff]
  %v30 = vld [vmem:[%s1] sm:$0xff]
  %v31 = vld [vmem:[%s2] sm:$0x1]
  %v33 = vlaneseq
  %v34 = vshrl.u32 %v33, 7
  %v35 = vsub.s32 0, %v34
  %v36 = vrot.slane %v31, %v35
  %vm38 = vcmask 64512
  %v40 = vsel %vm38, %v14, 0
  %v43 = vsel %vm38, %v15, 0
  %v46 = vsel %vm38, %v16, 0
  %v49 = vsel %vm38, %v17, 0
  %v52 = vsel %vm38, %v18, 0
  %v55 = vsel %vm38, %v19, 0
  %v58 = vsel %vm38, %v20, 0
  %v61 = vsel %vm38, %v21, 0
  %v64 = vsel %vm38, %v22, 0
  %v67 = vsel %vm38, %v23, 0
  %v70 = vsel %vm38, %v24, 0
  %v73 = vsel %vm38, %v25, 0
  %v76 = vsel %vm38, %v26, 0
  %v79 = vsel %vm38, %v27, 0
  %v82 = vsel %vm38, %v28, 0
  %v85 = vsel %vm38, %v29, 0
  %87 = vmatprep.subr.mxu0 0.0
  %88 = vmatpush1.msra.mxu0 %v30
  %89 = vmatprep.subr.mxu0 0.0
  %90 = vmatpush1.msra.mxu0 0.0
  %91 = vmatprep.subr.mxu0 0.0
  %92 = vmatpush1.msra.mxu0 0.0
  %93 = vmatprep.subr.mxu0 0.0
  %94 = vmatpush1.msra.mxu0 0.0
  %95 = vmatprep.subr.mxu0 0.0
  %96 = vmatpush1.msra.mxu0 0.0
  %97 = vmatprep.subr.mxu0 0.0
  %98 = vmatpush1.msra.mxu0 0.0
  %99 = vmatprep.subr.mxu0 0.0
  %100 = vmatpush1.msra.mxu0 0.0
  %101 = vmatprep.subr.mxu0 0.0
  %102 = vmatpush1.msra.mxu0 0.0
  %103 = vmatprep.subr.mxu0 0.0
  %104 = vmatpush1.msra.mxu0 0.0
  %105 = vmatprep.subr.mxu0 0.0
  %106 = vmatpush1.msra.mxu0 0.0
  %107 = vmatprep.subr.mxu0 0.0
  %108 = vmatpush1.msra.mxu0 0.0
  %109 = vmatprep.subr.mxu0 0.0
  %110 = vmatpush1.msra.mxu0 0.0
  %111 = vmatprep.subr.mxu0 0.0
  %112 = vmatpush1.msra.mxu0 0.0
  %113 = vmatprep.subr.mxu0 0.0
  %114 = vmatpush1.msra.mxu0 0.0
  %115 = vmatprep.subr.mxu0 0.0
  %116 = vmatpush1.msra.mxu0 0.0
  %117 = vmatprep.subr.mxu0 0.0
  %118 = vmatpush1.msra.mxu0 0.0
  %119 = vmatprep.subr.mxu0 0.0
  %120 = vmatpush1.msra.mxu0 0.0
  %121 = vmatprep.subr.mxu0 0.0
  %122 = vmatpush1.msra.mxu0 0.0
  %123 = vmatprep.subr.mxu0 0.0
  %124 = vmatpush1.msra.mxu0 0.0
  %125 = vmatprep.subr.mxu0 0.0
  %126 = vmatpush1.msra.mxu0 0.0
  %127 = vmatprep.subr.mxu0 0.0
  %128 = vmatpush1.msra.mxu0 0.0
  %129 = vmatprep.subr.mxu0 0.0
  %130 = vmatpush1.msra.mxu0 0.0
  %131 = vmatprep.subr.mxu0 0.0
  %132 = vmatpush1.msra.mxu0 0.0
  %133 = vmatprep.subr.mxu0 0.0
  %134 = vmatpush1.msra.mxu0 0.0
  %135 = vmatprep.subr.mxu0 0.0
  %136 = vmatpush1.msra.mxu0 0.0
  %137 = vmatprep.subr.mxu0 0.0
  %138 = vmatpush1.msra.mxu0 0.0
  %139 = vmatprep.subr.mxu0 0.0
  %140 = vmatpush1.msra.mxu0 0.0
  %141 = vmatprep.subr.mxu0 0.0
  %142 = vmatpush1.msra.mxu0 0.0
  %143 = vmatprep.subr.mxu0 0.0
  %144 = vmatpush1.msra.mxu0 0.0
  %145 = vmatprep.subr.mxu0 0.0
  %146 = vmatpush1.msra.mxu0 0.0
  %147 = vmatprep.subr.mxu0 0.0
  %148 = vmatpush1.msra.mxu0 0.0
  %149 = vmatprep.subr.mxu0 0.0
  %150 = vmatpush1.msra.mxu0 0.0
  %151 = vmatprep.mubr.f32.mxu0 0.0
  %152 = vmatmul.mubr.f32.gmra.mrb[0].mxu0 %v40
  %v153 = vpop.f32.mrb[0].mxu0
  %v154 = vadd.f32 %v36, %v153
  %v155 = vpop.f32.mrb[0].mxu0
  %156 = vmatprep.mubr.f32.mxu0 0.0
  %157 = vmatmul.mubr.f32.gmra.mrb[0].mxu0 %v43
  %v158 = vpop.f32.mrb[0].mxu0
  %v159 = vadd.f32 %v36, %v158
  %v160 = vpop.f32.mrb[0].mxu0
  %161 = vmatprep.mubr.f32.mxu0 0.0
  %162 = vmatmul.mubr.f32.gmra.mrb[0].mxu0 %v46
  %v163 = vpop.f32.mrb[0].mxu0
  %v164 = vadd.f32 %v36, %v163
  %v165 = vpop.f32.mrb[0].mxu0
  %166 = vmatprep.mubr.f32.mxu0 0.0
  %167 = vmatmul.mubr.f32.gmra.mrb[0].mxu0 %v49
  %v168 = vpop.f32.mrb[0].mxu0
  %v169 = vadd.f32 %v36, %v168
  %v170 = vpop.f32.mrb[0].mxu0
  %171 = vmatprep.mubr.f32.mxu0 0.0
  %172 = vmatmul.mubr.f32.gmra.mrb[0].mxu0 %v52
  %v173 = vpop.f32.mrb[0].mxu0
  %v174 = vadd.f32 %v36, %v173
  %v175 = vpop.f32.mrb[0].mxu0
  %176 = vmatprep.mubr.f32.mxu0 0.0
  %177 = vmatmul.mubr.f32.gmra.mrb[0].mxu0 %v55
  %v178 = vpop.f32.mrb[0].mxu0
  %v179 = vadd.f32 %v36, %v178
  %v180 = vpop.f32.mrb[0].mxu0
  %181 = vmatprep.mubr.f32.mxu0 0.0
  %182 = vmatmul.mubr.f32.gmra.mrb[0].mxu0 %v58
  %v183 = vpop.f32.mrb[0].mxu0
  %v184 = vadd.f32 %v36, %v183
  %v185 = vpop.f32.mrb[0].mxu0
  %186 = vmatprep.mubr.f32.mxu0 0.0
  %187 = vmatmul.mubr.f32.gmra.mrb[0].mxu0 %v61
  %v188 = vpop.f32.mrb[0].mxu0
  %v189 = vadd.f32 %v36, %v188
  %v190 = vpop.f32.mrb[0].mxu0
  %191 = vmatprep.mubr.f32.mxu0 0.0
  %192 = vmatmul.mubr.f32.gmra.mrb[0].mxu0 %v64
  %v193 = vpop.f32.mrb[0].mxu0
  %v194 = vadd.f32 %v36, %v193
  %v195 = vpop.f32.mrb[0].mxu0
  %196 = vmatprep.mubr.f32.mxu0 0.0
  %197 = vmatmul.mubr.f32.gmra.mrb[0].mxu0 %v67
  %v198 = vpop.f32.mrb[0].mxu0
  %v199 = vadd.f32 %v36, %v198
  %v200 = vpop.f32.mrb[0].mxu0
  %201 = vmatprep.mubr.f32.mxu0 0.0
  %202 = vmatmul.mubr.f32.gmra.mrb[0].mxu0 %v70
  %v203 = vpop.f32.mrb[0].mxu0
  %v204 = vadd.f32 %v36, %v203
  %v205 = vpop.f32.mrb[0].mxu0
  %206 = vmatprep.mubr.f32.mxu0 0.0
  %207 = vmatmul.mubr.f32.gmra.mrb[0].mxu0 %v73
  %v208 = vpop.f32.mrb[0].mxu0
  %v209 = vadd.f32 %v36, %v208
  %v210 = vpop.f32.mrb[0].mxu0
  %211 = vmatprep.mubr.f32.mxu0 0.0
  %212 = vmatmul.mubr.f32.gmra.mrb[0].mxu0 %v76
  %v213 = vpop.f32.mrb[0].mxu0
  %v214 = vadd.f32 %v36, %v213
  %v215 = vpop.f32.mrb[0].mxu0
  %216 = vmatprep.mubr.f32.mxu0 0.0
  %217 = vmatmul.mubr.f32.gmra.mrb[0].mxu0 %v79
  %v218 = vpop.f32.mrb[0].mxu0
  %v219 = vadd.f32 %v36, %v218
  %v220 = vpop.f32.mrb[0].mxu0
  %221 = vmatprep.mubr.f32.mxu0 0.0
  %222 = vmatmul.mubr.f32.gmra.mrb[0].mxu0 %v82
  %v223 = vpop.f32.mrb[0].mxu0
  %v224 = vadd.f32 %v36, %v223
  %v225 = vpop.f32.mrb[0].mxu0
  %226 = vmatprep.mubr.f32.mxu0 0.0
  %227 = vmatmul.mubr.f32.gmra.mrb[0].mxu0 %v85
  %v228 = vpop.f32.mrb[0].mxu0
  %v229 = vadd.f32 %v36, %v228
  %v230 = vpop.f32.mrb[0].mxu0
  %231 = vdwg.mxu0
  %vm232 = vcmask 130048
  %233 = vst.msk [vmem:[%s3] sm:$0xff] %vm232, %v154
  %234 = vst.msk [vmem:[%s3 + $0x8] sm:$0xff] %vm232, %v159
  %235 = vst.msk [vmem:[%s3 + $0x10] sm:$0xff] %vm232, %v164
  %236 = vst.msk [vmem:[%s3 + $0x18] sm:$0xff] %vm232, %v169
  %237 = vst.msk [vmem:[%s3 + $0x20] sm:$0xff] %vm232, %v174
  %238 = vst.msk [vmem:[%s3 + $0x28] sm:$0xff] %vm232, %v179
  %239 = vst.msk [vmem:[%s3 + $0x30] sm:$0xff] %vm232, %v184
  %240 = vst.msk [vmem:[%s3 + $0x38] sm:$0xff] %vm232, %v189
  %241 = vst.msk [vmem:[%s3 + $0x40] sm:$0xff] %vm232, %v194
  %242 = vst.msk [vmem:[%s3 + $0x48] sm:$0xff] %vm232, %v199
  %243 = vst.msk [vmem:[%s3 + $0x50] sm:$0xff] %vm232, %v204
  %244 = vst.msk [vmem:[%s3 + $0x58] sm:$0xff] %vm232, %v209
  %245 = vst.msk [vmem:[%s3 + $0x60] sm:$0xff] %vm232, %v214
  %246 = vst.msk [vmem:[%s3 + $0x68] sm:$0xff] %vm232, %v219
  %247 = vst.msk [vmem:[%s3 + $0x70] sm:$0xff] %vm232, %v224
  %248 = vst.msk [vmem:[%s3 + $0x78] sm:$0xff] %vm232, %v229
  // Predicated region
  $region14: #{tpu_custom_call.1} parent=0 // pred_check
    _
  $region15: #{tpu_custom_call.1} parent=0 // pred_check_branch
    %250 = sbr.rel (0) target = $region17
  $region16: #{tpu_custom_call.1} parent=0 // pred_region
    _
  $region17: #{tpu_custom_call.1} parent=0 // pred_fallthru
    _
  // Predicated region
  $region18: #{tpu_custom_call.1} parent=0 // pred_check
    _
  $region19: #{tpu_custom_call.1} parent=0 // pred_check_branch
    %252 = sbr.rel (0) target = $region21
  $region20: #{tpu_custom_call.1} parent=0 // pred_region
    _
  $region21: #{tpu_custom_call.1} parent=0 // pred_fallthru
    _

</llo_original>
